<compile_context>
chip_gen: v6e
topology: v6e:2x2x1
jax: 0.10.0
libtpu: 0.0.40
codegen_flags: <defaults>
</compile_context>

<pallas_src>
import functools

import jax
import jax.numpy as jnp
from jax.experimental import pallas as pl
from jax.experimental.pallas import tpu as pltpu


_LANES = 512            # lane-dense last dim (large multiple of 128 -> unmasked vst)
_BLOCK_ROWS_MAX = 1024  # 1024 x 512 x 4B = 2 MiB/block; double-buffered in+out
                        # = 8 MiB, fits the 16 MiB default scoped VMEM on v5e and
                        # leaves ample headroom on v6e (32 MiB) / v7x (32/64 MiB).


def _hash_u32(x):
    """lowbias32-style avalanche hash; all uint32 VPU ops (no TPU PRNG primitive)."""
    x = x ^ (x >> 16)
    x = x * jnp.uint32(0x7FEB352D)
    x = x ^ (x >> 15)
    x = x * jnp.uint32(0x846CA68B)
    x = x ^ (x >> 16)
    return x


def _dropout_kernel(seed_ref, x_ref, o_ref, *, threshold, scale):
    rows, lanes = x_ref.shape
    # Global element index -> per-element random bits (stateless, so results do
    # not depend on grid-step-to-core assignment).
    row_idx = jax.lax.broadcasted_iota(jnp.int32, (rows, lanes), 0).astype(jnp.uint32)
    lane_idx = jax.lax.broadcasted_iota(jnp.int32, (rows, lanes), 1).astype(jnp.uint32)
    base = pl.program_id(0).astype(jnp.uint32) * jnp.uint32(rows * lanes)
    gidx = base + row_idx * jnp.uint32(lanes) + lane_idx

    seed = seed_ref[0].astype(jnp.uint32)
    bits = _hash_u32(gidx ^ (seed * jnp.uint32(0x9E3779B9)))     # uint32 bits
    keep = bits >= jnp.uint32(threshold)                         # unsigned compare

    # Single select + compile-time-constant scale: no mask cast, no extra mul.
    x = x_ref[...]
    o_ref[...] = jnp.where(keep, x * jnp.asarray(scale, x.dtype),
                           jnp.asarray(0, x.dtype))


def pos_encoding_forward(seq, dropout=None, *, seed=0, training=False):
    """JAX/Pallas equivalent of PosEncoding.forward (no positional encoding)."""
    rate = 0.0 if dropout is None else float(dropout)

    if (not training) or rate <= 0.0:
        # get_dropout(None) / eval mode -> identity.  No kernel launch at all.
        return seq
    if rate >= 1.0:
        # torch.nn.Dropout(p=1.0) zeroes everything in training mode; also avoids
        # the infinite 1/(1-p) scale.
        return jnp.zeros_like(seq)

    orig_shape = seq.shape
    n = int(seq.size)
    flat = seq.reshape(-1)

    # Row-tiled, lane-dense 2D layout: [rows, 512].  Decouples tile size from
    # the model shape (B, S, H) and keeps stores unmasked.
    rows_total = -(-n // _LANES)
    if rows_total <= _BLOCK_ROWS_MAX:
        block_rows = rows_total          # block == full array on the row axis
        padded_rows = rows_total
    else:
        block_rows = _BLOCK_ROWS_MAX     # multiple of 8
        padded_rows = (-(-rows_total // block_rows)) * block_rows
    padded_n = padded_rows * _LANES
    if padded_n != n:
        flat = jnp.pad(flat, (0, padded_n - n))
    x2d = flat.reshape(padded_rows, _LANES)
    grid = (padded_rows // block_rows,)

    threshold = min(int(round(rate * (2 ** 32))), 2 ** 32 - 1)
    scale = 1.0 / (1.0 - rate)
    seed_arr = jnp.asarray([seed], dtype=jnp.int32)

    block = (block_rows, _LANES)
    out2d = pl.pallas_call(
        functools.partial(_dropout_kernel, threshold=threshold, scale=scale),
        out_shape=jax.ShapeDtypeStruct(x2d.shape, x2d.dtype),
        grid_spec=pltpu.PrefetchScalarGridSpec(
            num_scalar_prefetch=1,   # seed lives in SMEM
            grid=grid,
            in_specs=[pl.BlockSpec(block, lambda i, seed_ref: (i, 0))],
            out_specs=pl.BlockSpec(block, lambda i, seed_ref: (i, 0)),
        ),
        compiler_params=pltpu.CompilerParams(
            # Mask depends only on (seed, global index): safe to shard the grid
            # across TensorCores (v7x megacore).
            dimension_semantics=("parallel",),
        ),
        # NOTE: for very large activations, input_output_aliases={1: 0} would
        # reuse seq's HBM buffer for the output (footprint win only; traffic is
        # unchanged).  Left off here to keep one simple code path.
    )(seed_arr, x2d)

    return out2d.reshape(-1)[:n].reshape(orig_shape)


if __name__ == "__main__":
    key = jax.random.PRNGKey(0)
    B, S, H = 2, 8, 32
    seq = jax.random.normal(key, (B, S, H), dtype=jnp.float32)

    # Default module config: dropout=None -> identity forward (no kernel launch).
    out = jax.block_until_ready(pos_encoding_forward(seq, dropout=None))
    assert out.shape == seq.shape and out.dtype == seq.dtype
    assert jnp.array_equal(out, seq), "identity pos-encoding must return input unchanged"

    # Training-mode dropout path exercises the Pallas kernel.
    rate = 0.1
    out_drop = jax.block_until_ready(
        pos_encoding_forward(seq, dropout=rate, seed=123, training=True)
    )
    assert out_drop.shape == seq.shape and out_drop.dtype == seq.dtype

    scale = 1.0 / (1.0 - rate)
    scaled = seq * scale
    ok = jnp.all((out_drop == 0) | (jnp.abs(out_drop - scaled) < 1e-5))
    assert bool(ok), "dropout output must be either 0 or input/(1-p)"
    keep_frac = float(jnp.mean((out_drop != 0).astype(jnp.float32)))
    assert 0.6 <= keep_frac <= 1.0, f"unexpected keep fraction {keep_frac}"

    print("KERNEL_OK")
</pallas_src>

<mosaic_0001>
module attributes {stable_mosaic.version = 11 : i64} {
  func.func @_dropout_kernel(%arg0: i32, %arg1: memref<1xi32, #tpu.memory_space<smem>>, %arg2: memref<1x512xf32, #tpu.memory_space<vmem>>, %arg3: memref<1x512xf32, #tpu.memory_space<vmem>>) attributes {dimension_semantics = [#tpu.dimension_semantics<parallel>], iteration_bounds = array<i64: 1>, scalar_prefetch = 1 : i64, scratch_operands = 0 : i64, tpu.core_type = #tpu.core_type<tc>, window_params = [{transform_indices = @transform_0, window_bounds = array<i64: 1, 512>}, {transform_indices = @transform_1, window_bounds = array<i64: 1, 512>}]} {
    %0 = tpu.iota {dimensions = array<i32: 0>} : vector<1x512xi32>
    %1 = tpu.iota {dimensions = array<i32: 1>} : vector<1x512xi32>
    %c512_i32 = arith.constant 512 : i32
    %2 = arith.muli %arg0, %c512_i32 : i32
    %c512_i32_0 = arith.constant 512 : i32
    %3 = vector.broadcast %c512_i32_0 : i32 to vector<1x512xi32>
    %4 = arith.muli %0, %3 : vector<1x512xi32>
    %5 = vector.broadcast %2 : i32 to vector<1x512xi32>
    %6 = arith.addi %5, %4 : vector<1x512xi32>
    %7 = arith.addi %6, %1 : vector<1x512xi32>
    %c0 = arith.constant 0 : index
    %8 = memref.load %arg1[%c0] : memref<1xi32, #tpu.memory_space<smem>>
    %c-1640531527_i32 = arith.constant -1640531527 : i32
    %9 = arith.muli %8, %c-1640531527_i32 : i32
    %10 = vector.broadcast %9 : i32 to vector<1x512xi32>
    %11 = arith.xori %7, %10 : vector<1x512xi32>
    %c16_i32 = arith.constant 16 : i32
    %12 = vector.broadcast %c16_i32 : i32 to vector<1x512xi32>
    %13 = arith.shrui %11, %12 : vector<1x512xi32>
    %14 = arith.xori %11, %13 : vector<1x512xi32>
    %c2146121005_i32 = arith.constant 2146121005 : i32
    %15 = vector.broadcast %c2146121005_i32 : i32 to vector<1x512xi32>
    %16 = arith.muli %14, %15 : vector<1x512xi32>
    %c15_i32 = arith.constant 15 : i32
    %17 = vector.broadcast %c15_i32 : i32 to vector<1x512xi32>
    %18 = arith.shrui %16, %17 : vector<1x512xi32>
    %19 = arith.xori %16, %18 : vector<1x512xi32>
    %c-2073254261_i32 = arith.constant -2073254261 : i32
    %20 = vector.broadcast %c-2073254261_i32 : i32 to vector<1x512xi32>
    %21 = arith.muli %19, %20 : vector<1x512xi32>
    %c16_i32_1 = arith.constant 16 : i32
    %22 = vector.broadcast %c16_i32_1 : i32 to vector<1x512xi32>
    %23 = arith.shrui %21, %22 : vector<1x512xi32>
    %24 = arith.xori %21, %23 : vector<1x512xi32>
    %c429496730_i32 = arith.constant 429496730 : i32
    %25 = vector.broadcast %c429496730_i32 : i32 to vector<1x512xi32>
    %26 = arith.cmpi uge, %24, %25 : vector<1x512xi32>
    %c0_2 = arith.constant 0 : index
    %c0_3 = arith.constant 0 : index
    %27 = vector.load %arg2[%c0_2, %c0_3] : memref<1x512xf32, #tpu.memory_space<vmem>>, vector<1x512xf32>
    %cst = arith.constant 1.11111116 : f32
    %28 = vector.broadcast %cst : f32 to vector<1x512xf32>
    %29 = arith.mulf %27, %28 : vector<1x512xf32>
    %cst_4 = arith.constant 0.000000e+00 : f32
    %30 = vector.broadcast %cst_4 : f32 to vector<1x512xf32>
    %31 = arith.select %26, %29, %30 : vector<1x512xi1>, vector<1x512xf32>
    %c0_5 = arith.constant 0 : index
    %c0_6 = arith.constant 0 : index
    %32 = vector.load %arg3[%c0_5, %c0_6] : memref<1x512xf32, #tpu.memory_space<vmem>>, vector<1x512xf32>
    tpu.vector_store %arg3[%c0_5, %c0_6], %31 {strides = array<i32>} : memref<1x512xf32, #tpu.memory_space<vmem>>, vector<1x512xf32>,
    return
  }
  func.func @transform_0(%arg0: i32, %arg1: memref<1xi32, #tpu.memory_space<smem>>) -> (i32, i32) {
    %c0_i32 = arith.constant 0 : i32
    %c0_i32_0 = arith.constant 0 : i32
    return %arg0, %c0_i32 : i32, i32
  }
  func.func @transform_1(%arg0: i32, %arg1: memref<1xi32, #tpu.memory_space<smem>>) -> (i32, i32) {
    %c0_i32 = arith.constant 0 : i32
    %c0_i32_0 = arith.constant 0 : i32
    return %arg0, %c0_i32 : i32, i32
  }
}

</mosaic_0001>

<llo_original>
// kernel: tpu_custom_call.1
$region0: #{tpu_custom_call.1}
  #allocation0 [shape = 'u32[]', space=smem, size = 0x4, offset = 0x4, fixed_abs, tag = 'smem constant byte address 0x4 - core index']
  #allocation1 [shape = 'u32[144,128]{1,0:T(1,128)}', space=vmem, size = 0x12000, scoped, tag = 'internal scratch']
  #allocation2 [shape = 's32[1]{0}', space=sflag, size = 0x4, scoped, tag = 'scoped memory for tpu_custom_call.1']
  #allocation3 [shape = 's32[1]{0:T(128)S(6)}', space=smem, size = 0x200, scoped, tag = 'prefetched SMEM operand 0']
  %s0 = inlined_call_operand.<no memory space> [shape: s32[1], index: 0, kind: input, shape index: {}]
  %s1 = inlined_call_operand.hbm [shape: f32[1,512], index: 1, kind: input, shape index: {}]
  %s2 = inlined_call_operand.hbm [shape: f32[1,512], index: 2, kind: output, shape index: {}]
  %s3 = sld [smem:[#allocation0]]
  $region18: #{tpu_custom_call.1} parent=0
    _
  %s5 = ssub.s32 1, %s3
  %s6 = scalar_select 0, %s5, %s3
  %7 = sst [smem:[#allocation3]] %s0
  $region1: #{tpu_custom_call.1} parent=0
    #allocation4 [shape = 'u8[2048]{0}', space=vmem, size = 0x800, scoped, tag = 'input window, operand 1, single buffered']
    #allocation5 [shape = 's32[1]{0}', space=sflag, size = 0x4, scoped, tag = 'scoped memory for tpu_custom_call.1']
    #allocation6 [shape = 's32[1]{0}', space=sflag, size = 0x4, scoped, tag = 'scoped memory for tpu_custom_call.1']
    #allocation7 [shape = 'u8[2048]{0}', space=vmem, size = 0x800, scoped, tag = 'output window, operand 0, single buffered']
    %8 = vsyncpa [#allocation5], 0
    %9 = vsyncpa [#allocation6], 0
    // Predicated region
    $region2: #{tpu_custom_call.1} parent=1 // pred_check
      _
    $region3: #{tpu_custom_call.1} parent=1 // pred_check_branch
      %11 = sbr.rel (0) target = $region5
    $region4: #{tpu_custom_call.1} parent=1 // pred_region
      %s13 = ssub.s32 64, 64
      %14 = vsyncadd [#allocation5], %s13
      %s16 = sshll.u32 [#allocation4], 4
      %s17 = int_to_ptr.vmem [resolvable:$true] %s16
      %19 = dma.hbm_to_vmem [thread:$0]  %s1, 64, %s17, [#allocation5]
    $region5: #{tpu_custom_call.1} parent=1 // pred_fallthru
      _
    // Predicated region
    $region6: #{tpu_custom_call.1} parent=1 // pred_check
      _
    $region7: #{tpu_custom_call.1} parent=1 // pred_check_branch
      %21 = sbr.rel (0) target = $region9
    $region8: #{tpu_custom_call.1} parent=1 // pred_region
      %22 = dma.done [#allocation5], 64
    $region9: #{tpu_custom_call.1} parent=1 // pred_fallthru
      _
    %v23 = vlaneseq
    %v24 = vshrl.u32 %v23, 7
    %v25 = vlaneseq
    %v26 = vand.u32 %v25, 127
    %v27 = vadd.s32 %v26, 128
    %v28 = vadd.s32 %v26, 256
    %v29 = vadd.s32 %v26, 384
    %s30 = smul.u32 0, 512
    %v31 = vmul.u32 %v24, 512
    %v32 = vstv %s30
    %v33 = vadd.s32 %v32, %v31
    %v34 = vadd.s32 %v33, %v26
    %v35 = vadd.s32 %v33, %v27
    %v36 = vadd.s32 %v33, %v28
    %v37 = vadd.s32 %v33, %v29
    %s38 = sld [smem:[#allocation3]]
    %s39 = smul.u32 %s38, 2654435769
    %v40 = vstv %s39
    %v41 = vxor.u32 %v34, %v40
    %v42 = vxor.u32 %v35, %v40
    %v43 = vxor.u32 %v36, %v40
    %v44 = vxor.u32 %v37, %v40
    %v45 = vshrl.u32 %v41, 16
    %v46 = vshrl.u32 %v42, 16
    %v47 = vshrl.u32 %v43, 16
    %v48 = vshrl.u32 %v44, 16
    %v49 = vxor.u32 %v41, %v45
    %v50 = vxor.u32 %v42, %v46
    %v51 = vxor.u32 %v43, %v47
    %v52 = vxor.u32 %v44, %v48
    %v53 = vmul.u32 %v49, 2146121005
    %v54 = vmul.u32 %v50, 2146121005
    %v55 = vmul.u32 %v51, 2146121005
    %v56 = vmul.u32 %v52, 2146121005
    %v57 = vshrl.u32 %v53, 15
    %v58 = vshrl.u32 %v54, 15
    %v59 = vshrl.u32 %v55, 15
    %v60 = vshrl.u32 %v56, 15
    %v61 = vxor.u32 %v53, %v57
    %v62 = vxor.u32 %v54, %v58
    %v63 = vxor.u32 %v55, %v59
    %v64 = vxor.u32 %v56, %v60
    %v65 = vmul.u32 %v61, 2221713035
    %v66 = vmul.u32 %v62, 2221713035
    %v67 = vmul.u32 %v63, 2221713035
    %v68 = vmul.u32 %v64, 2221713035
    %v69 = vshrl.u32 %v65, 16
    %v70 = vshrl.u32 %v66, 16
    %v71 = vshrl.u32 %v67, 16
    %v72 = vshrl.u32 %v68, 16
    %v73 = vxor.u32 %v65, %v69
    %v74 = vxor.u32 %v66, %v70
    %v75 = vxor.u32 %v67, %v71
    %v76 = vxor.u32 %v68, %v72
    %vm77 = vcmp.ge.u32.totalorder %v73, 429496730
    %vm78 = vcmp.ge.u32.totalorder %v74, 429496730
    %vm79 = vcmp.ge.u32.totalorder %v75, 429496730
    %vm80 = vcmp.ge.u32.totalorder %v76, 429496730
    %v81 = vld [vmem:[#allocation4] sm:$0xf]
    %v82 = vmul.f32 %v81, 1.1111112
    %v84 = vlaneseq
    %v85 = vshrl.u32 %v84, 7
    %v86 = vsub.s32 0, %v85
    %v87 = vrot.slane %v82, %v86
    %v88 = vlaneseq
    %v89 = vshrl.u32 %v88, 7
    %v90 = vsub.s32 1, %v89
    %v91 = vrot.slane %v82, %v90
    %v92 = vlaneseq
    %v93 = vshrl.u32 %v92, 7
    %v94 = vsub.s32 2, %v93
    %v95 = vrot.slane %v82, %v94
    %v96 = vlaneseq
    %v97 = vshrl.u32 %v96, 7
    %v98 = vsub.s32 3, %v97
    %v99 = vrot.slane %v82, %v98
    %v104 = vsel %vm77, %v87, 0.0
    %v105 = vsel %vm78, %v91, 0.0
    %v106 = vsel %vm79, %v95, 0.0
    %v107 = vsel %vm80, %v99, 0.0
    %v112 = vcombine.low %v104, %v105
    %v113 = vcombine.low %v106, %v107
    %v115 = vunpack.c.l.s4 1966171168
    %v116 = vunpack.c.0.s8 %v115
    %v117 = vlaneseq
    %v118 = vshrl.u32 %v117, 7
    %v119 = vsub.s32 %v116, %v118
    %v120 = vrot.slane %v112, %v119
    %v122 = vunpack.c.l.s4 1966171168
    %v123 = vunpack.c.0.s8 %v122
    %v124 = vlaneseq
    %v125 = vshrl.u32 %v124, 7
    %v126 = vsub.s32 %v123, %v125
    %v127 = vrot.slane %v113, %v126
    %v128 = vcombine.low %v120, %v127
    %v130 = vunpack.c.l.s4 1966171168
    %v131 = vunpack.c.0.s8 %v130
    %v132 = vlaneseq
    %v133 = vshrl.u32 %v132, 7
    %v134 = vsub.s32 %v131, %v133
    %v135 = vrot.slane %v128, %v134
    %v137 = vlaneseq
    %vm138 = vcmp.ge.s32.totalorder %v137, 0
    %vm139 = vcmp.lt.s32.totalorder %v137, 512
    %vm140 = vmand %vm138, %vm139
    %141 = vst.msk [vmem:[#allocation7] sm:$0xf] %vm140, %v135
    // Predicated region
    $region10: #{tpu_custom_call.1} parent=1 // pred_check
      _
    $region11: #{tpu_custom_call.1} parent=1 // pred_check_branch
      %143 = sbr.rel (0) target = $region13
    $region12: #{tpu_custom_call.1} parent=1 // pred_region
      %s145 = ssub.s32 64, 64
      %146 = vsyncadd [#allocation6], %s145
      %s148 = sshll.u32 [#allocation7], 4
      %s149 = int_to_ptr.vmem [resolvable:$true] %s148
      %151 = dma.vmem_to_hbm [thread:$0]  %s149, 64, %s2, [#allocation6]
    $region13: #{tpu_custom_call.1} parent=1 // pred_fallthru
      _
    // Predicated region
    $region14: #{tpu_custom_call.1} parent=1 // pred_check
      _
    $region15: #{tpu_custom_call.1} parent=1 // pred_check_branch
      %153 = sbr.rel (0) target = $region17
    $region16: #{tpu_custom_call.1} parent=1 // pred_region
      %154 = dma.done [#allocation6], 64
    $region17: #{tpu_custom_call.1} parent=1 // pred_fallthru
      _
    %155 = vsyncpa [#allocation5], 1
    %156 = vsyncpa [#allocation6], 1

</llo_original>
